<compile_context>
chip_gen: v7x
topology: tpu7x:2x2x1
jax: 0.10.0
libtpu: 0.0.40
codegen_flags: <defaults>
</compile_context>

<pallas_src>
import functools

import jax
import jax.numpy as jnp
from jax.experimental import pallas as pl
from jax.experimental.pallas import tpu as pltpu


def _channel_gate_kernel(x_ref, w1_ref, b1_ref, w2_ref, b2_ref, o_ref, *, hw_true):
    """Fused ChannelGate for one tile of B batch samples.

    x_ref:  (B, C, HWp)  B samples; channels on sublanes, spatial on lanes
    w1_ref: (mid, C)     fc1.weight (PyTorch layout)
    b1_ref: (mid, 1)     fc1.bias as a column
    w2_ref: (C, mid)     fc2.weight (PyTorch layout)
    b2_ref: (C, 1)       fc2.bias as a column
    o_ref:  (B, C, HWp)
    hw_true: the un-padded H*W (static)
    """
    B, C, HWp = x_ref.shape
    x = x_ref[...]                                   # native dtype, no f32 copy

    # ---- adaptive avg / max pooling over the spatial (lane) axis ----------
    # f32 accumulation; zero-padded lanes do not perturb the sum, and we
    # divide by the true H*W.
    avg = jnp.sum(x, axis=-1, keepdims=True, dtype=jnp.float32) * (1.0 / hw_true)
    if HWp != hw_true:
        # padded lanes must not win the max -> mask them (static branch).
        lane = jax.lax.broadcasted_iota(jnp.int32, (B, C, HWp), 2)
        neg = jnp.array(jnp.finfo(x.dtype).min, dtype=x.dtype)
        xm = jnp.where(lane < hw_true, x, neg)
    else:
        xm = x
    mx = jnp.max(xm, axis=-1, keepdims=True).astype(jnp.float32)   # (B, C, 1)

    # ---- batch the shared MLP across the whole tile -----------------------
    # pooled: (C, 2B) lane-dense; columns [avg_0..avg_{B-1}, max_0..max_{B-1}]
    cols = [avg[b] for b in range(B)] + [mx[b] for b in range(B)]
    pooled = jnp.concatenate(cols, axis=-1)                         # (C, 2B)

    w1 = w1_ref[...].astype(jnp.float32)                            # (mid, C)
    w2 = w2_ref[...].astype(jnp.float32)                            # (C, mid)
    h = jnp.dot(w1, pooled, preferred_element_type=jnp.float32) + b1_ref[...]
    h = jnp.maximum(h, 0.0)                                         # (mid, 2B)
    out = jnp.dot(w2, h, preferred_element_type=jnp.float32) + b2_ref[...]  # (C, 2B)

    # att = sigmoid(MLP(avg) + MLP(max)) per sample -> (C, B)
    att = jax.nn.sigmoid(out[:, :B] + out[:, B:2 * B])

    # Reassemble per-sample (C, 1) columns into (B, C, 1); the rescale is then
    # a single lane-broadcast multiply and one dense full-slab store.
    att_b = jnp.concatenate(
        [att[:, b:b + 1][None, :, :] for b in range(B)], axis=0)    # (B, C, 1)
    o_ref[...] = x * att_b.astype(x.dtype)


def channel_gate_pallas(x_nchw, fc1_w, fc1_b, fc2_w, fc2_b):
    """ChannelGate forward.

    x_nchw: (N, C, H, W)
    fc1_w:  (mid, C), fc1_b: (mid,)   -- PyTorch nn.Linear layout
    fc2_w:  (C, mid), fc2_b: (C,)
    returns (N, C, H, W)
    """
    N, C, H, W = x_nchw.shape
    HW = H * W
    mid = fc1_w.shape[0]
    itemsize = jnp.dtype(x_nchw.dtype).itemsize

    # Free, contiguous reshape (no transpose): spatial on the lane axis.
    x = x_nchw.reshape(N, C, HW)

    # Pad the lane axis to a multiple of 128 so all stores are dense vst.
    HWp = ((HW + 127) // 128) * 128
    if HWp != HW:
        x = jnp.pad(x, ((0, 0), (0, 0), (0, HWp - HW)))  # zeros; max masked in-kernel

    b1c = fc1_b.reshape(mid, 1).astype(jnp.float32)
    b2c = fc2_b.reshape(C, 1).astype(jnp.float32)

    # ---- batch-tile sizing (mem-bound: big DMA windows) --------------------
    # ~4 MiB per input tile (so in+out double-buffered stays well under the
    # 48 MiB scoped-VMEM budget), but keep >= 2 grid steps when N >= 2 so
    # both TensorCores on v7x get work.
    bytes_per_sample = C * HWp * itemsize
    b_tile = max(1, min(32, (4 * 1024 * 1024) // max(1, bytes_per_sample)))
    b_tile = min(b_tile, N)
    if N >= 2:
        b_tile = min(b_tile, pl.cdiv(N, 2))
    grid = (pl.cdiv(N, b_tile),)

    kernel = functools.partial(_channel_gate_kernel, hw_true=HW)

    cost = pl.CostEstimate(
        flops=3 * N * C * HWp + 4 * N * (mid * C + C * mid),
        transcendentals=N * C,
        bytes_accessed=2 * N * C * HWp * itemsize,
    )

    out = pl.pallas_call(
        kernel,
        out_shape=jax.ShapeDtypeStruct((N, C, HWp), x_nchw.dtype),
        grid=grid,
        in_specs=[
            pl.BlockSpec((b_tile, C, HWp), lambda i: (i, 0, 0)),
            pl.BlockSpec((mid, C), lambda i: (0, 0)),
            pl.BlockSpec((mid, 1), lambda i: (0, 0)),
            pl.BlockSpec((C, mid), lambda i: (0, 0)),
            pl.BlockSpec((C, 1), lambda i: (0, 0)),
        ],
        out_specs=pl.BlockSpec((b_tile, C, HWp), lambda i: (i, 0, 0)),
        compiler_params=pltpu.CompilerParams(
            dimension_semantics=("parallel",),
            vmem_limit_bytes=48 * 1024 * 1024,
        ),
        cost_estimate=cost,
    )(x, fc1_w, b1c, fc2_w, b2c)

    if HWp != HW:
        out = out[:, :, :HW]
    return out.reshape(N, C, H, W)


def _reference(x, fc1_w, fc1_b, fc2_w, fc2_b):
    """Pure-JAX reference matching the PyTorch ChannelGate forward."""
    xf = x.astype(jnp.float32)
    avg = jnp.mean(xf, axis=(2, 3))                      # (N, C)
    mx = jnp.max(xf, axis=(2, 3))                        # (N, C)

    def mlp(v):
        h = jnp.maximum(v @ fc1_w.T + fc1_b, 0.0)
        return h @ fc2_w.T + fc2_b

    att = jax.nn.sigmoid(mlp(avg) + mlp(mx))             # (N, C)
    return (xf * att[:, :, None, None]).astype(x.dtype)


if __name__ == "__main__":
    key = jax.random.PRNGKey(0)
    k_x, k_w1, k_b1, k_w2, k_b2, k_x2 = jax.random.split(key, 6)

    # channels must be >= reduction_ratio (default 16) for a non-empty MLP.
    N, C, H, W = 2, 64, 16, 16
    reduction_ratio = 16
    mid = C // reduction_ratio

    x = jax.random.normal(k_x, (N, C, H, W), jnp.float32)
    fc1_w = 0.2 * jax.random.normal(k_w1, (mid, C), jnp.float32)
    fc1_b = 0.1 * jax.random.normal(k_b1, (mid,), jnp.float32)
    fc2_w = 0.2 * jax.random.normal(k_w2, (C, mid), jnp.float32)
    fc2_b = 0.1 * jax.random.normal(k_b2, (C,), jnp.float32)

    # Case 1: HW already a multiple of 128 (no padding path).
    out = channel_gate_pallas(x, fc1_w, fc1_b, fc2_w, fc2_b)
    out = jax.block_until_ready(out)
    ref = _reference(x, fc1_w, fc1_b, fc2_w, fc2_b)
    assert out.shape == (N, C, H, W), out.shape
    err = float(jnp.max(jnp.abs(out - ref)))
    assert err < 1e-4, err

    # Case 2: HW not a multiple of 128 (14x14=196) exercises the lane-padding
    # path (zero-pad sum, -max-masked max, dense stores, output slice-back).
    H2 = W2 = 14
    x2 = jax.random.normal(k_x2, (N, C, H2, W2), jnp.float32) - 0.5
    out2 = channel_gate_pallas(x2, fc1_w, fc1_b, fc2_w, fc2_b)
    out2 = jax.block_until_ready(out2)
    ref2 = _reference(x2, fc1_w, fc1_b, fc2_w, fc2_b)
    assert out2.shape == (N, C, H2, W2), out2.shape
    err2 = float(jnp.max(jnp.abs(out2 - ref2)))
    assert err2 < 1e-4, err2

    print("KERNEL_OK")
</pallas_src>

<mosaic_0001>
module attributes {stable_mosaic.version = 11 : i64} {
  func.func @_channel_gate_kernel(%arg0: i32, %arg1: memref<1x64x256xf32, #tpu.memory_space<vmem>>, %arg2: memref<4x64xf32, #tpu.memory_space<vmem>>, %arg3: memref<4x1xf32, #tpu.memory_space<vmem>>, %arg4: memref<64x4xf32, #tpu.memory_space<vmem>>, %arg5: memref<64x1xf32, #tpu.memory_space<vmem>>, %arg6: memref<1x64x256xf32, #tpu.memory_space<vmem>>) attributes {dimension_semantics = [#tpu.dimension_semantics<parallel>], iteration_bounds = array<i64: 2>, scalar_prefetch = 0 : i64, scratch_operands = 0 : i64, tpu.core_type = #tpu.core_type<tc>, window_params = [{transform_indices = @transform_0, window_bounds = array<i64: 1, 64, 256>}, {pipeline_mode = #tpu.pipeline_mode<synchronous>, transform_indices = @transform_1, window_bounds = array<i64: 4, 64>}, {pipeline_mode = #tpu.pipeline_mode<synchronous>, transform_indices = @transform_2, window_bounds = array<i64: 4, 1>}, {pipeline_mode = #tpu.pipeline_mode<synchronous>, transform_indices = @transform_3, window_bounds = array<i64: 64, 4>}, {pipeline_mode = #tpu.pipeline_mode<synchronous>, transform_indices = @transform_4, window_bounds = array<i64: 64, 1>}, {transform_indices = @transform_5, window_bounds = array<i64: 1, 64, 256>}]} {
    %c0 = arith.constant 0 : index
    %c0_0 = arith.constant 0 : index
    %c0_1 = arith.constant 0 : index
    %0 = vector.load %arg1[%c0, %c0_0, %c0_1] : memref<1x64x256xf32, #tpu.memory_space<vmem>>, vector<1x64x256xf32>
    %cst = arith.constant dense<0.000000e+00> : vector<1x64xf32>
    %1 = vector.multi_reduction <add>, %0, %cst [2] : vector<1x64x256xf32> to vector<1x64xf32>
    %2 = vector.shape_cast %1 : vector<1x64xf32> to vector<1x64x1xf32>
    %cst_2 = arith.constant 3.906250e-03 : f32
    %3 = vector.broadcast %cst_2 : f32 to vector<1x64x1xf32>
    %4 = arith.mulf %2, %3 : vector<1x64x1xf32>
    %cst_3 = arith.constant dense<0xFF800000> : vector<1x64xf32>
    %5 = vector.multi_reduction <maximumf>, %0, %cst_3 [2] : vector<1x64x256xf32> to vector<1x64xf32>
    %6 = vector.shape_cast %5 : vector<1x64xf32> to vector<1x64x1xf32>
    %7 = vector.shape_cast %4 : vector<1x64x1xf32> to vector<64x1xf32>
    %8 = vector.shape_cast %6 : vector<1x64x1xf32> to vector<64x1xf32>
    %9 = tpu.concatenate %7, %8 in 1 : vector<64x1xf32>, vector<64x1xf32> -> vector<64x2xf32>
    %c0_4 = arith.constant 0 : index
    %c0_5 = arith.constant 0 : index
    %10 = vector.load %arg2[%c0_4, %c0_5] : memref<4x64xf32, #tpu.memory_space<vmem>>, vector<4x64xf32>
    %c0_6 = arith.constant 0 : index
    %c0_7 = arith.constant 0 : index
    %11 = vector.load %arg4[%c0_6, %c0_7] : memref<64x4xf32, #tpu.memory_space<vmem>>, vector<64x4xf32>
    %cst_8 = arith.constant dense<0.000000e+00> : vector<4x2xf32>
    %12 = tpu.matmul %10, %9, %cst_8 {dimension_numbers = #tpu.dot_dimension_numbers<[1], [0], [0], [1], [0, 0, 1, 1], [], []>} : vector<4x64xf32>, vector<64x2xf32>, vector<4x2xf32> -> vector<4x2xf32>
    %c0_9 = arith.constant 0 : index
    %c0_10 = arith.constant 0 : index
    %13 = vector.load %arg3[%c0_9, %c0_10] : memref<4x1xf32, #tpu.memory_space<vmem>>, vector<4x1xf32>
    %14 = vector.broadcast %13 : vector<4x1xf32> to vector<4x2xf32>
    %15 = arith.addf %12, %14 : vector<4x2xf32>
    %cst_11 = arith.constant 0.000000e+00 : f32
    %16 = vector.broadcast %cst_11 : f32 to vector<4x2xf32>
    %17 = arith.maximumf %15, %16 : vector<4x2xf32>
    %cst_12 = arith.constant dense<0.000000e+00> : vector<64x2xf32>
    %18 = tpu.matmul %11, %17, %cst_12 {dimension_numbers = #tpu.dot_dimension_numbers<[1], [0], [0], [1], [0, 0, 1, 1], [], []>} : vector<64x4xf32>, vector<4x2xf32>, vector<64x2xf32> -> vector<64x2xf32>
    %c0_13 = arith.constant 0 : index
    %c0_14 = arith.constant 0 : index
    %19 = vector.load %arg5[%c0_13, %c0_14] : memref<64x1xf32, #tpu.memory_space<vmem>>, vector<64x1xf32>
    %20 = vector.broadcast %19 : vector<64x1xf32> to vector<64x2xf32>
    %21 = arith.addf %18, %20 : vector<64x2xf32>
    %22 = vector.extract_strided_slice %21 {offsets = [0, 0], sizes = [64, 1], strides = [1, 1]} : vector<64x2xf32> to vector<64x1xf32>
    %23 = vector.extract_strided_slice %21 {offsets = [0, 1], sizes = [64, 1], strides = [1, 1]} : vector<64x2xf32> to vector<64x1xf32>
    %24 = arith.addf %22, %23 : vector<64x1xf32>
    %25 = arith.negf %24 : vector<64x1xf32>
    %26 = math.exp %25 : vector<64x1xf32>
    %cst_15 = arith.constant 1.000000e+00 : f32
    %27 = vector.broadcast %cst_15 : f32 to vector<64x1xf32>
    %28 = arith.addf %27, %26 : vector<64x1xf32>
    %29 = arith.divf %27, %28 : vector<64x1xf32>
    %30 = vector.shape_cast %29 : vector<64x1xf32> to vector<1x64x1xf32>
    %31 = vector.broadcast %30 : vector<1x64x1xf32> to vector<1x64x256xf32>
    %32 = arith.mulf %0, %31 : vector<1x64x256xf32>
    %c0_16 = arith.constant 0 : index
    %c0_17 = arith.constant 0 : index
    %c0_18 = arith.constant 0 : index
    %33 = vector.load %arg6[%c0_16, %c0_17, %c0_18] : memref<1x64x256xf32, #tpu.memory_space<vmem>>, vector<1x64x256xf32>
    tpu.vector_store %arg6[%c0_16, %c0_17, %c0_18], %32 {strides = array<i32>} : memref<1x64x256xf32, #tpu.memory_space<vmem>>, vector<1x64x256xf32>,
    return
  }
  func.func @transform_0(%arg0: i32) -> (i32, i32, i32) {
    %c0_i32 = arith.constant 0 : i32
    %c0_i32_0 = arith.constant 0 : i32
    %c0_i32_1 = arith.constant 0 : i32
    return %arg0, %c0_i32, %c0_i32_0 : i32, i32, i32
  }
  func.func @transform_1(%arg0: i32) -> (i32, i32) {
    %c0_i32 = arith.constant 0 : i32
    %c0_i32_0 = arith.constant 0 : i32
    %c0_i32_1 = arith.constant 0 : i32
    return %c0_i32, %c0_i32_0 : i32, i32
  }
  func.func @transform_2(%arg0: i32) -> (i32, i32) {
    %c0_i32 = arith.constant 0 : i32
    %c0_i32_0 = arith.constant 0 : i32
    %c0_i32_1 = arith.constant 0 : i32
    return %c0_i32, %c0_i32_0 : i32, i32
  }
  func.func @transform_3(%arg0: i32) -> (i32, i32) {
    %c0_i32 = arith.constant 0 : i32
    %c0_i32_0 = arith.constant 0 : i32
    %c0_i32_1 = arith.constant 0 : i32
    return %c0_i32, %c0_i32_0 : i32, i32
  }
  func.func @transform_4(%arg0: i32) -> (i32, i32) {
    %c0_i32 = arith.constant 0 : i32
    %c0_i32_0 = arith.constant 0 : i32
    %c0_i32_1 = arith.constant 0 : i32
    return %c0_i32, %c0_i32_0 : i32, i32
  }
  func.func @transform_5(%arg0: i32) -> (i32, i32, i32) {
    %c0_i32 = arith.constant 0 : i32
    %c0_i32_0 = arith.constant 0 : i32
    %c0_i32_1 = arith.constant 0 : i32
    return %arg0, %c0_i32, %c0_i32_0 : i32, i32, i32
  }
}

</mosaic_0001>

<llo_original>
// kernel: tpu_custom_call.1
$region0: #{tpu_custom_call.1}
  #allocation0 [shape = 'u32[]', space=smem, size = 0x4, offset = 0x4, fixed_abs, tag = 'smem constant byte address 0x4 - core index']
  #allocation1 [shape = 'u32[144,128]{1,0:T(1,128)}', space=vmem, size = 0x12000, scoped, tag = 'internal scratch']
  %s0 = inlined_call_operand.hbm [shape: f32[2,64,256], index: 0, kind: input, shape index: {}]
  %s1 = inlined_call_operand.vmem [shape: f32[4,64], index: 1, kind: input, shape index: {}]
  %s2 = inlined_call_operand.vmem [shape: f32[4,1], index: 2, kind: input, shape index: {}]
  %s3 = inlined_call_operand.vmem [shape: f32[64,4], index: 3, kind: input, shape index: {}]
  %s4 = inlined_call_operand.vmem [shape: f32[64,1], index: 4, kind: input, shape index: {}]
  %s5 = inlined_call_operand.hbm [shape: f32[2,64,256], index: 5, kind: output, shape index: {}]
  %s6 = sld [smem:[#allocation0]]
  $region57: #{tpu_custom_call.1} parent=0
    _
  %s8 = ssub.s32 1, %s6
  %s9 = scalar_select 0, %s8, %s6
  $region1: #{tpu_custom_call.1} parent=0
    #allocation2 [shape = 'u8[131072]{0}', space=vmem, size = 0x20000, scoped, tag = 'input window, operand 0']
    #allocation3 [shape = 's32[2]{0}', space=sflag, size = 0x8, scoped, tag = 'scoped memory for tpu_custom_call.1']
    #allocation4 [shape = 's32[2]{0}', space=sflag, size = 0x8, scoped, tag = 'scoped memory for tpu_custom_call.1']
    #allocation5 [shape = 'u8[131072]{0}', space=vmem, size = 0x20000, scoped, tag = 'output window, operand 0']
    %10 = vsyncpa [#allocation3], 0
    %s11 = scalar_lea.sflag [#allocation3], 1
    %12 = vsyncpa %s11, 0
    %13 = vsyncpa [#allocation4], 0
    %s14 = scalar_lea.sflag [#allocation4], 1
    %15 = vsyncpa %s14, 0
    loop: start=0, step=1, limit=4
    $region2: #{tpu_custom_call.1} parent=1 // loop_pre_header
      _
    $region3: #{tpu_custom_call.1} parent=1 // loop_header
      %s17 = sphi 0, %s21
      %p18 = scmp.ge.s32.totalorder %s17, 4
      %s27 = sphi 0, %s29
      %s30 = sphi 0, %s27
      %s31 = sphi 0, %s30
      %s47 = sphi 0, %s31
      %s51 = sphi 0, %s51
      %s53 = sphi 0, %s51
      %s54 = sphi 0, %s53
      %s68 = sphi 0, %s54
      %s72 = sphi 0, %s72
      %s74 = sphi 0, %s72
      %s75 = sphi 0, %s74
      %s89 = sphi 0, %s75
      %s93 = sphi 0, %s93
      %s95 = sphi 0, %s93
      %s96 = sphi 0, %s95
      %s110 = sphi 0, %s96
      %s114 = sphi 0, %s114
      %s116 = sphi 0, %s114
      %s117 = sphi 0, %s116
      %s131 = sphi 0, %s117
      %s137 = sphi 0, %s139
      %s140 = sphi 0, %s137
      %s141 = sphi 0, %s140
      %s157 = sphi 0, %s141
    $region4: #{tpu_custom_call.1} parent=1 // loop_header_branch
      %20 = sbr.rel (%p18) target = $region8
    $region5: #{tpu_custom_call.1} parent=1 // loop_body
      %s22 = ssub.s32 %s17, 1
      %s23 = ssub.s32 %s17, 2
      %s24 = sadd.s32 %s17, 1
      %s25 = ssub.s32 %s17, %s24
      %p26 = scmp.eq.s32.totalorder %s25, 0
      %s28 = sadd.s32 %s27, 1
      %s29 = scalar_select %p26, %s27, %s28
      %p32 = pneg %p26
      %p33 = scmp.eq.s32.totalorder %s17, 1
      %p34 = por %p32, %p33
      %p35 = scmp.ne.s32.totalorder %s27, %s30
      %p36 = scmp.eq.s32.totalorder %s17, 0
      %p37 = por %p35, %p36
      %p38 = scmp.ne.s32.totalorder %s27, %s30
      %p39 = scmp.eq.s32.totalorder %s22, 1
      %p40 = por %p38, %p39
      %p41 = scmp.ne.s32.totalorder %s30, %s31
      %p42 = scmp.eq.s32.totalorder %s22, 0
      %p43 = por %p41, %p42
      %p44 = scmp.ne.s32.totalorder %s30, %s31
      %p45 = scmp.eq.s32.totalorder %s23, 1
      %p46 = por %p44, %p45
      %p48 = scmp.ne.s32.totalorder %s31, %s47
      %p49 = scmp.eq.s32.totalorder %s23, 0
      %p50 = por %p48, %p49
      %s52 = sadd.s32 %s51, 1
      %p55 = scmp.eq.s32.totalorder %s17, 1
      %p56 = scmp.ne.s32.totalorder %s51, %s53
      %p57 = scmp.eq.s32.totalorder %s17, 0
      %p58 = por %p56, %p57
      %p59 = scmp.ne.s32.totalorder %s51, %s53
      %p60 = scmp.eq.s32.totalorder %s22, 1
      %p61 = por %p59, %p60
      %p62 = scmp.ne.s32.totalorder %s53, %s54
      %p63 = scmp.eq.s32.totalorder %s22, 0
      %p64 = por %p62, %p63
      %p65 = scmp.ne.s32.totalorder %s53, %s54
      %p66 = scmp.eq.s32.totalorder %s23, 1
      %p67 = por %p65, %p66
      %p69 = scmp.ne.s32.totalorder %s54, %s68
      %p70 = scmp.eq.s32.totalorder %s23, 0
      %p71 = por %p69, %p70
      %s73 = sadd.s32 %s72, 1
      %p76 = scmp.eq.s32.totalorder %s17, 1
      %p77 = scmp.ne.s32.totalorder %s72, %s74
      %p78 = scmp.eq.s32.totalorder %s17, 0
      %p79 = por %p77, %p78
      %p80 = scmp.ne.s32.totalorder %s72, %s74
      %p81 = scmp.eq.s32.totalorder %s22, 1
      %p82 = por %p80, %p81
      %p83 = scmp.ne.s32.totalorder %s74, %s75
      %p84 = scmp.eq.s32.totalorder %s22, 0
      %p85 = por %p83, %p84
      %p86 = scmp.ne.s32.totalorder %s74, %s75
      %p87 = scmp.eq.s32.totalorder %s23, 1
      %p88 = por %p86, %p87
      %p90 = scmp.ne.s32.totalorder %s75, %s89
      %p91 = scmp.eq.s32.totalorder %s23, 0
      %p92 = por %p90, %p91
      %s94 = sadd.s32 %s93, 1
      %p97 = scmp.eq.s32.totalorder %s17, 1
      %p98 = scmp.ne.s32.totalorder %s93, %s95
      %p99 = scmp.eq.s32.totalorder %s17, 0
      %p100 = por %p98, %p99
      %p101 = scmp.ne.s32.totalorder %s93, %s95
      %p102 = scmp.eq.s32.totalorder %s22, 1
      %p103 = por %p101, %p102
      %p104 = scmp.ne.s32.totalorder %s95, %s96
      %p105 = scmp.eq.s32.totalorder %s22, 0
      %p106 = por %p104, %p105
      %p107 = scmp.ne.s32.totalorder %s95, %s96
      %p108 = scmp.eq.s32.totalorder %s23, 1
      %p109 = por %p107, %p108
      %p111 = scmp.ne.s32.totalorder %s96, %s110
      %p112 = scmp.eq.s32.totalorder %s23, 0
      %p113 = por %p111, %p112
      %s115 = sadd.s32 %s114, 1
      %p118 = scmp.eq.s32.totalorder %s17, 1
      %p119 = scmp.ne.s32.totalorder %s114, %s116
      %p120 = scmp.eq.s32.totalorder %s17, 0
      %p121 = por %p119, %p120
      %p122 = scmp.ne.s32.totalorder %s114, %s116
      %p123 = scmp.eq.s32.totalorder %s22, 1
      %p124 = por %p122, %p123
      %p125 = scmp.ne.s32.totalorder %s116, %s117
      %p126 = scmp.eq.s32.totalorder %s22, 0
      %p127 = por %p125, %p126
      %p128 = scmp.ne.s32.totalorder %s116, %s117
      %p129 = scmp.eq.s32.totalorder %s23, 1
      %p130 = por %p128, %p129
      %p132 = scmp.ne.s32.totalorder %s117, %s131
      %p133 = scmp.eq.s32.totalorder %s23, 0
      %p134 = por %p132, %p133
      %s135 = ssub.s32 %s17, %s24
      %p136 = scmp.eq.s32.totalorder %s135, 0
      %s138 = sadd.s32 %s137, 1
      %s139 = scalar_select %p136, %s137, %s138
      %p142 = pneg %p136
      %p143 = scmp.eq.s32.totalorder %s17, 1
      %p144 = por %p142, %p143
      %p145 = scmp.ne.s32.totalorder %s137, %s140
      %p146 = scmp.eq.s32.totalorder %s17, 0
      %p147 = por %p145, %p146
      %p148 = scmp.ne.s32.totalorder %s137, %s140
      %p149 = scmp.eq.s32.totalorder %s22, 1
      %p150 = por %p148, %p149
      %p151 = scmp.ne.s32.totalorder %s140, %s141
      %p152 = scmp.eq.s32.totalorder %s22, 0
      %p153 = por %p151, %p152
      %p154 = scmp.ne.s32.totalorder %s140, %s141
      %p155 = scmp.eq.s32.totalorder %s23, 1
      %p156 = por %p154, %p155
      %p158 = scmp.ne.s32.totalorder %s141, %s157
      %p159 = scmp.eq.s32.totalorder %s23, 0
      %p160 = por %p158, %p159
      %p161 = scmp.le.s32.totalorder 1, %s17
      %p162 = scmp.lt.s32.totalorder %s17, 3
      %p163 = pnand %p161, %p162
      %p164 = pneg %p163
      // Predicated region
      $region9: #{tpu_custom_call.1} parent=5 // pred_check
        _
      $region10: #{tpu_custom_call.1} parent=5 // pred_check_branch
        %166 = sbr.rel (%p163) target = $region12
      $region11: #{tpu_custom_call.1} parent=5 // pred_region
        %s167 = ssub.s32 %s17, 1
        // Predicated region
        $region13: #{tpu_custom_call.1} parent=11 // pred_check
          %p168 = pneg %p64
        $region14: #{tpu_custom_call.1} parent=11 // pred_check_branch
          %170 = sbr.rel (%p168) target = $region16
        $region15: #{tpu_custom_call.1} parent=11 // pred_region
          _
        $region16: #{tpu_custom_call.1} parent=11 // pred_fallthru
          _
        // Predicated region
        $region17: #{tpu_custom_call.1} parent=11 // pred_check
          %p171 = pneg %p85
        $region18: #{tpu_custom_call.1} parent=11 // pred_check_branch
          %173 = sbr.rel (%p171) target = $region20
        $region19: #{tpu_custom_call.1} parent=11 // pred_region
          _
        $region20: #{tpu_custom_call.1} parent=11 // pred_fallthru
          _
        // Predicated region
        $region21: #{tpu_custom_call.1} parent=11 // pred_check
          %p174 = pneg %p106
        $region22: #{tpu_custom_call.1} parent=11 // pred_check_branch
          %176 = sbr.rel (%p174) target = $region24
        $region23: #{tpu_custom_call.1} parent=11 // pred_region
          _
        $region24: #{tpu_custom_call.1} parent=11 // pred_fallthru
          _
        // Predicated region
        $region25: #{tpu_custom_call.1} parent=11 // pred_check
          %p177 = pneg %p127
        $region26: #{tpu_custom_call.1} parent=11 // pred_check_branch
          %179 = sbr.rel (%p177) target = $region28
        $region27: #{tpu_custom_call.1} parent=11 // pred_region
          _
        $region28: #{tpu_custom_call.1} parent=11 // pred_fallthru
          _
      $region12: #{tpu_custom_call.1} parent=5 // pred_fallthru
        _
      %p180 = scmp.lt.s32.totalorder %s17, 2
      // Predicated region
      $region29: #{tpu_custom_call.1} parent=5 // pred_check
        %p181 = pneg %p180
      $region30: #{tpu_custom_call.1} parent=5 // pred_check_branch
        %183 = sbr.rel (%p181) target = $region32
      $region31: #{tpu_custom_call.1} parent=5 // pred_region
        // Predicated region
        $region33: #{tpu_custom_call.1} parent=31 // pred_check
          %p184 = pneg %p37
        $region34: #{tpu_custom_call.1} parent=31 // pred_check_branch
          %186 = sbr.rel (%p184) target = $region36
        $region35: #{tpu_custom_call.1} parent=31 // pred_region
          %s187 = sand.u32 %s27, 1
          %s188 = scalar_lea.sflag [#allocation3], %s187
          %s189 = sand.u32 %s27, 1
          %s190 = smul.addr %s189, 128
          %s191 = scalar_lea.vmem [#allocation2], %s190
          %s193 = ssub.s32 2048, 2048
          %194 = vsyncadd %s188, %s193
          %s195 = smul.addr %s17, 16
          %s196 = smul.addr %s195, 128
          %s197 = scalar_lea.hbm %s0, %s196
          %s198 = sshll.u32 %s191, 4
          %s199 = int_to_ptr.vmem [resolvable:$true] %s198
          %204 = dma.hbm_to_vmem [thread:$0]  %s197, 2048, %s199, %s188, 256, 256, 16
        $region36: #{tpu_custom_call.1} parent=31 // pred_fallthru
          _
      $region32: #{tpu_custom_call.1} parent=5 // pred_fallthru
        _
      %p205 = scmp.le.s32.totalorder 1, %s17
      %p206 = scmp.lt.s32.totalorder %s17, 3
      %p207 = pnand %p205, %p206
      %p208 = pneg %p207
      // Predicated region
      $region37: #{tpu_custom_call.1} parent=5 // pred_check
        _
      $region38: #{tpu_custom_call.1} parent=5 // pred_check_branch
        %210 = sbr.rel (%p207) target = $region40
      $region39: #{tpu_custom_call.1} parent=5 // pred_region
        %s211 = ssub.s32 %s17, 1
        %s212 = sand.u32 %s30, 1
        %s213 = scalar_lea.sflag [#allocation3], %s212
        %s214 = sand.u32 %s30, 1
        %s215 = smul.addr %s214, 128
        %s216 = scalar_lea.vmem [#allocation2], %s215
        // Predicated region
        $region41: #{tpu_custom_call.1} parent=39 // pred_check
          %p217 = pneg %p43
        $region42: #{tpu_custom_call.1} parent=39 // pred_check_branch
          %219 = sbr.rel (%p217) target = $region44
        $region43: #{tpu_custom_call.1} parent=39 // pred_region
          %220 = dma.done %s213, 2048
        $region44: #{tpu_custom_call.1} parent=39 // pred_fallthru
          _
        %s221 = sand.u32 %s30, 1
        %s222 = scalar_lea.sflag [#allocation3], %s221
        %s223 = sand.u32 %s30, 1
        %s224 = smul.addr %s223, 128
        %s225 = scalar_lea.vmem [#allocation2], %s224
        %p226 = pneg %p43
        %p227 = pneg %p40
        %p228 = pneg %p64
        %p229 = pneg %p61
        %p230 = pneg %p85
        %p231 = pneg %p82
        %p232 = pneg %p106
        %p233 = pneg %p103
        %p234 = pneg %p127
        %p235 = pneg %p124
        %p236 = pneg %p153
        %p237 = pneg %p150
        %s238 = sand.u32 %s140, 1
        %s239 = scalar_lea.sflag [#allocation4], %s238
        %s240 = sand.u32 %s140, 1
        %s241 = smul.addr %s240, 128
        %s242 = scalar_lea.vmem [#allocation5], %s241
        %v243 = vld [vmem:[%s216] sm:$0xff]
        %v244 = vld [vmem:[%s216 + $0x8] sm:$0xff]
        %v245 = vld [vmem:[%s216 + $0x10] sm:$0xff]
        %v246 = vld [vmem:[%s216 + $0x18] sm:$0xff]
        %v247 = vld [vmem:[%s216 + $0x20] sm:$0xff]
        %v248 = vld [vmem:[%s216 + $0x28] sm:$0xff]
        %v249 = vld [vmem:[%s216 + $0x30] sm:$0xff]
        %v250 = vld [vmem:[%s216 + $0x38] sm:$0xff]
        %v251 = vld [vmem:[%s216 + $0x40] sm:$0xff]
        %v252 = vld [vmem:[%s216 + $0x48] sm:$0xff]
        %v253 = vld [vmem:[%s216 + $0x50] sm:$0xff]
        %v254 = vld [vmem:[%s216 + $0x58] sm:$0xff]
        %v255 = vld [vmem:[%s216 + $0x60] sm:$0xff]
        %v256 = vld [vmem:[%s216 + $0x68] sm:$0xff]
        %v257 = vld [vmem:[%s216 + $0x70] sm:$0xff]
        %v258 = vld [vmem:[%s216 + $0x78] sm:$0xff]
        %v259 = vadd.f32 %v243, %v244
        %260 = vadd.xlane.f32.xlu0 %v259
        %v261 = vpop.xlane.xlu0 %260
        %v262 = vadd.f32 %v245, %v246
        %263 = vadd.xlane.f32.xlu0 %v262
        %v264 = vpop.xlane.xlu0 %263
        %v265 = vadd.f32 %v247, %v248
        %266 = vadd.xlane.f32.xlu0 %v265
        %v267 = vpop.xlane.xlu0 %266
        %v268 = vadd.f32 %v249, %v250
        %269 = vadd.xlane.f32.xlu0 %v268
        %v270 = vpop.xlane.xlu0 %269
        %v271 = vadd.f32 %v251, %v252
        %272 = vadd.xlane.f32.xlu0 %v271
        %v273 = vpop.xlane.xlu0 %272
        %v274 = vadd.f32 %v253, %v254
        %275 = vadd.xlane.f32.xlu0 %v274
        %v276 = vpop.xlane.xlu0 %275
        %v277 = vadd.f32 %v255, %v256
        %278 = vadd.xlane.f32.xlu0 %v277
        %v279 = vpop.xlane.xlu0 %278
        %v280 = vadd.f32 %v257, %v258
        %281 = vadd.xlane.f32.xlu0 %v280
        %v282 = vpop.xlane.xlu0 %281
        %v283 = vmul.f32 %v261, 0.00390625
        %v284 = vmul.f32 %v264, 0.00390625
        %v285 = vmul.f32 %v267, 0.00390625
        %v286 = vmul.f32 %v270, 0.00390625
        %v287 = vmul.f32 %v273, 0.00390625
        %v288 = vmul.f32 %v276, 0.00390625
        %v289 = vmul.f32 %v279, 0.00390625
        %v290 = vmul.f32 %v282, 0.00390625
        %v291 = vmax.f32 %v243, %v244
        %292 = vmax.xlane.f32.xlu0 %v291
        %v293 = vpop.xlane.xlu0 %292
        %v294 = vmax.f32 %v245, %v246
        %295 = vmax.xlane.f32.xlu0 %v294
        %v296 = vpop.xlane.xlu0 %295
        %v297 = vmax.f32 %v247, %v248
        %298 = vmax.xlane.f32.xlu0 %v297
        %v299 = vpop.xlane.xlu0 %298
        %v300 = vmax.f32 %v249, %v250
        %301 = vmax.xlane.f32.xlu0 %v300
        %v302 = vpop.xlane.xlu0 %301
        %v303 = vmax.f32 %v251, %v252
        %304 = vmax.xlane.f32.xlu0 %v303
        %v305 = vpop.xlane.xlu0 %304
        %v306 = vmax.f32 %v253, %v254
        %307 = vmax.xlane.f32.xlu0 %v306
        %v308 = vpop.xlane.xlu0 %307
        %v309 = vmax.f32 %v255, %v256
        %310 = vmax.xlane.f32.xlu0 %v309
        %v311 = vpop.xlane.xlu0 %310
        %v312 = vmax.f32 %v257, %v258
        %313 = vmax.xlane.f32.xlu0 %v312
        %v314 = vpop.xlane.xlu0 %313
        %vm315 = vcmask 7168
        %v316 = vsel %vm315, %v283, %v293
        %v317 = vsel %vm315, %v284, %v296
        %v318 = vsel %vm315, %v285, %v299
        %v319 = vsel %vm315, %v286, %v302
        %v320 = vsel %vm315, %v287, %v305
        %v321 = vsel %vm315, %v288, %v308
        %v322 = vsel %vm315, %v289, %v311
        %v323 = vsel %vm315, %v290, %v314
        %v324 = vld [vmem:[%s1] sm:$0xf]
        %v325 = vld [vmem:[%s3] sm:$0xff]
        %v326 = vld [vmem:[%s3 + $0x8] sm:$0xff]
        %v327 = vld [vmem:[%s3 + $0x10] sm:$0xff]
        %v328 = vld [vmem:[%s3 + $0x18] sm:$0xff]
        %v329 = vld [vmem:[%s3 + $0x20] sm:$0xff]
        %v330 = vld [vmem:[%s3 + $0x28] sm:$0xff]
        %v331 = vld [vmem:[%s3 + $0x30] sm:$0xff]
        %v332 = vld [vmem:[%s3 + $0x38] sm:$0xff]
        %v333 = vld [vmem:[%s2] sm:$0xf]
        %335 = vset.pattern.permute.xlu0 0
        %336 = vperm.xlu0 %335, %v333
        %v337 = vpop.permute.xlu0 %336
        %vm339 = vcmask 523264
        %v341 = vsel %vm339, %v324, 0
        %343 = vmatprep.subr.mxu0 0.0
        %344 = vmatpush1.msra.mxu0 %v316
        %345 = vmatprep.subr.mxu0 0.0
        %346 = vmatpush1.msra.mxu0 %v317
        %347 = vmatprep.subr.mxu0 0.0
        %348 = vmatpush1.msra.mxu0 %v318
        %349 = vmatprep.subr.mxu0 0.0
        %350 = vmatpush1.msra.mxu0 %v319
        %351 = vmatprep.subr.mxu0 0.0
        %352 = vmatpush1.msra.mxu0 %v320
        %353 = vmatprep.subr.mxu0 0.0
        %354 = vmatpush1.msra.mxu0 %v321
        %355 = vmatprep.subr.mxu0 0.0
        %356 = vmatpush1.msra.mxu0 %v322
        %357 = vmatprep.subr.mxu0 0.0
        %358 = vmatpush1.msra.mxu0 %v323
        %359 = vmatprep.subr.mxu0 0.0
        %360 = vmatpush1.msra.mxu0 0.0
        %361 = vmatprep.subr.mxu0 0.0
        %362 = vmatpush1.msra.mxu0 0.0
        %363 = vmatprep.subr.mxu0 0.0
        %364 = vmatpush1.msra.mxu0 0.0
        %365 = vmatprep.subr.mxu0 0.0
        %366 = vmatpush1.msra.mxu0 0.0
        %367 = vmatprep.subr.mxu0 0.0
        %368 = vmatpush1.msra.mxu0 0.0
        %369 = vmatprep.subr.mxu0 0.0
        %370 = vmatpush1.msra.mxu0 0.0
        %371 = vmatprep.subr.mxu0 0.0
        %372 = vmatpush1.msra.mxu0 0.0
        %373 = vmatprep.subr.mxu0 0.0
        %374 = vmatpush1.msra.mxu0 0.0
        %375 = vmatprep.subr.mxu0 0.0
        %376 = vmatpush1.msra.mxu0 0.0
        %377 = vmatprep.subr.mxu0 0.0
        %378 = vmatpush1.msra.mxu0 0.0
        %379 = vmatprep.subr.mxu0 0.0
        %380 = vmatpush1.msra.mxu0 0.0
        %381 = vmatprep.subr.mxu0 0.0
        %382 = vmatpush1.msra.mxu0 0.0
        %383 = vmatprep.subr.mxu0 0.0
        %384 = vmatpush1.msra.mxu0 0.0
        %385 = vmatprep.subr.mxu0 0.0
        %386 = vmatpush1.msra.mxu0 0.0
        %387 = vmatprep.subr.mxu0 0.0
        %388 = vmatpush1.msra.mxu0 0.0
        %389 = vmatprep.subr.mxu0 0.0
        %390 = vmatpush1.msra.mxu0 0.0
        %391 = vmatprep.subr.mxu0 0.0
        %392 = vmatpush1.msra.mxu0 0.0
        %393 = vmatprep.subr.mxu0 0.0
        %394 = vmatpush1.msra.mxu0 0.0
        %395 = vmatprep.subr.mxu0 0.0
        %396 = vmatpush1.msra.mxu0 0.0
        %397 = vmatprep.subr.mxu0 0.0
        %398 = vmatpush1.msra.mxu0 0.0
        %399 = vmatprep.subr.mxu0 0.0
        %400 = vmatpush1.msra.mxu0 0.0
        %401 = vmatprep.subr.mxu0 0.0
        %402 = vmatpush1.msra.mxu0 0.0
        %403 = vmatprep.subr.mxu0 0.0
        %404 = vmatpush1.msra.mxu0 0.0
        %405 = vmatprep.subr.mxu0 0.0
        %406 = vmatpush1.msra.mxu0 0.0
        %407 = vmatprep.mubr.f32.mxu0 0.0
        %408 = vmatmul.mubr.f32.gmra.mrb[0].mxu0 %v341
        %v409 = vpop.f32.mrb[0].mxu0
        %v410 = vadd.f32 %v337, %v409
        %v411 = vpop.f32.mrb[0].mxu0
        %412 = vdwg.mxu0
        %v413 = vmax.f32 %v410, 0.0
        %v414 = vld [vmem:[%s4] sm:$0xff]
        %v415 = vld [vmem:[%s4 + $0x8] sm:$0xff]
        %v416 = vld [vmem:[%s4 + $0x10] sm:$0xff]
        %v417 = vld [vmem:[%s4 + $0x18] sm:$0xff]
        %v418 = vld [vmem:[%s4 + $0x20] sm:$0xff]
        %v419 = vld [vmem:[%s4 + $0x28] sm:$0xff]
        %v420 = vld [vmem:[%s4 + $0x30] sm:$0xff]
        %v421 = vld [vmem:[%s4 + $0x38] sm:$0xff]
        %423 = vset.pattern.permute.xlu0 0
        %424 = vperm.xlu0 %423, %v414
        %v425 = vpop.permute.xlu0 %424
        %428 = vset.pattern.permute.xlu0 0
        %429 = vperm.xlu0 %428, %v415
        %v430 = vpop.permute.xlu0 %429
        %433 = vset.pattern.permute.xlu0 0
        %434 = vperm.xlu0 %433, %v416
        %v435 = vpop.permute.xlu0 %434
        %438 = vset.pattern.permute.xlu0 0
        %439 = vperm.xlu0 %438, %v417
        %v440 = vpop.permute.xlu0 %439
        %443 = vset.pattern.permute.xlu0 0
        %444 = vperm.xlu0 %443, %v418
        %v445 = vpop.permute.xlu0 %444
        %448 = vset.pattern.permute.xlu0 0
        %449 = vperm.xlu0 %448, %v419
        %v450 = vpop.permute.xlu0 %449
        %453 = vset.pattern.permute.xlu0 0
        %454 = vperm.xlu0 %453, %v420
        %v455 = vpop.permute.xlu0 %454
        %458 = vset.pattern.permute.xlu0 0
        %459 = vperm.xlu0 %458, %v421
        %v460 = vpop.permute.xlu0 %459
        %vm462 = vcmask 31744
        %v464 = vsel %vm462, %v325, 0
        %v467 = vsel %vm462, %v326, 0
        %v470 = vsel %vm462, %v327, 0
        %v473 = vsel %vm462, %v328, 0
        %v476 = vsel %vm462, %v329, 0
        %v479 = vsel %vm462, %v330, 0
        %v482 = vsel %vm462, %v331, 0
        %v485 = vsel %vm462, %v332, 0
        %vm487 = vcmask 1043456
        %v489 = vsel %vm487, %v413, 0
        %491 = vmatprep.subr.mxu0 0.0
        %492 = vmatpush1.msra.mxu0 %v489
        %493 = vmatprep.subr.mxu0 0.0
        %494 = vmatpush1.msra.mxu0 0.0
        %495 = vmatprep.subr.mxu0 0.0
        %496 = vmatpush1.msra.mxu0 0.0
        %497 = vmatprep.subr.mxu0 0.0
        %498 = vmatpush1.msra.mxu0 0.0
        %499 = vmatprep.subr.mxu0 0.0
        %500 = vmatpush1.msra.mxu0 0.0
        %501 = vmatprep.subr.mxu0 0.0
        %502 = vmatpush1.msra.mxu0 0.0
        %503 = vmatprep.subr.mxu0 0.0
        %504 = vmatpush1.msra.mxu0 0.0
        %505 = vmatprep.subr.mxu0 0.0
        %506 = vmatpush1.msra.mxu0 0.0
        %507 = vmatprep.subr.mxu0 0.0
        %508 = vmatpush1.msra.mxu0 0.0
        %509 = vmatprep.subr.mxu0 0.0
        %510 = vmatpush1.msra.mxu0 0.0
        %511 = vmatprep.subr.mxu0 0.0
        %512 = vmatpush1.msra.mxu0 0.0
        %513 = vmatprep.subr.mxu0 0.0
        %514 = vmatpush1.msra.mxu0 0.0
        %515 = vmatprep.subr.mxu0 0.0
        %516 = vmatpush1.msra.mxu0 0.0
        %517 = vmatprep.subr.mxu0 0.0
        %518 = vmatpush1.msra.mxu0 0.0
        %519 = vmatprep.subr.mxu0 0.0
        %520 = vmatpush1.msra.mxu0 0.0
        %521 = vmatprep.subr.mxu0 0.0
        %522 = vmatpush1.msra.mxu0 0.0
        %523 = vmatprep.subr.mxu0 0.0
        %524 = vmatpush1.msra.mxu0 0.0
        %525 = vmatprep.subr.mxu0 0.0
        %526 = vmatpush1.msra.mxu0 0.0
        %527 = vmatprep.subr.mxu0 0.0
        %528 = vmatpush1.msra.mxu0 0.0
        %529 = vmatprep.subr.mxu0 0.0
        %530 = vmatpush1.msra.mxu0 0.0
        %531 = vmatprep.subr.mxu0 0.0
        %532 = vmatpush1.msra.mxu0 0.0
        %533 = vmatprep.subr.mxu0 0.0
        %534 = vmatpush1.msra.mxu0 0.0
        %535 = vmatprep.subr.mxu0 0.0
        %536 = vmatpush1.msra.mxu0 0.0
        %537 = vmatprep.subr.mxu0 0.0
        %538 = vmatpush1.msra.mxu0 0.0
        %539 = vmatprep.subr.mxu0 0.0
        %540 = vmatpush1.msra.mxu0 0.0
        %541 = vmatprep.subr.mxu0 0.0
        %542 = vmatpush1.msra.mxu0 0.0
        %543 = vmatprep.subr.mxu0 0.0
        %544 = vmatpush1.msra.mxu0 0.0
        %545 = vmatprep.subr.mxu0 0.0
        %546 = vmatpush1.msra.mxu0 0.0
        %547 = vmatprep.subr.mxu0 0.0
        %548 = vmatpush1.msra.mxu0 0.0
        %549 = vmatprep.subr.mxu0 0.0
        %550 = vmatpush1.msra.mxu0 0.0
        %551 = vmatprep.subr.mxu0 0.0
        %552 = vmatpush1.msra.mxu0 0.0
        %553 = vmatprep.subr.mxu0 0.0
        %554 = vmatpush1.msra.mxu0 0.0
        %555 = vmatprep.mubr.f32.mxu0 0.0
        %556 = vmatmul.mubr.f32.gmra.mrb[0].mxu0 %v464
        %v557 = vpop.f32.mrb[0].mxu0
        %v558 = vadd.f32 %v425, %v557
        %v559 = vpop.f32.mrb[0].mxu0
        %560 = vmatprep.mubr.f32.mxu0 0.0
        %561 = vmatmul.mubr.f32.gmra.mrb[0].mxu0 %v467
        %v562 = vpop.f32.mrb[0].mxu0
        %v563 = vadd.f32 %v430, %v562
        %v564 = vpop.f32.mrb[0].mxu0
        %565 = vmatprep.mubr.f32.mxu0 0.0
        %566 = vmatmul.mubr.f32.gmra.mrb[0].mxu0 %v470
        %v567 = vpop.f32.mrb[0].mxu0
        %v568 = vadd.f32 %v435, %v567
        %v569 = vpop.f32.mrb[0].mxu0
        %570 = vmatprep.mubr.f32.mxu0 0.0
        %571 = vmatmul.mubr.f32.gmra.mrb[0].mxu0 %v473
        %v572 = vpop.f32.mrb[0].mxu0
        %v573 = vadd.f32 %v440, %v572
        %v574 = vpop.f32.mrb[0].mxu0
        %575 = vmatprep.mubr.f32.mxu0 0.0
        %576 = vmatmul.mubr.f32.gmra.mrb[0].mxu0 %v476
        %v577 = vpop.f32.mrb[0].mxu0
        %v578 = vadd.f32 %v445, %v577
        %v579 = vpop.f32.mrb[0].mxu0
        %580 = vmatprep.mubr.f32.mxu0 0.0
        %581 = vmatmul.mubr.f32.gmra.mrb[0].mxu0 %v479
        %v582 = vpop.f32.mrb[0].mxu0
        %v583 = vadd.f32 %v450, %v582
        %v584 = vpop.f32.mrb[0].mxu0
        %585 = vmatprep.mubr.f32.mxu0 0.0
        %586 = vmatmul.mubr.f32.gmra.mrb[0].mxu0 %v482
        %v587 = vpop.f32.mrb[0].mxu0
        %v588 = vadd.f32 %v455, %v587
        %v589 = vpop.f32.mrb[0].mxu0
        %590 = vmatprep.mubr.f32.mxu0 0.0
        %591 = vmatmul.mubr.f32.gmra.mrb[0].mxu0 %v485
        %v592 = vpop.f32.mrb[0].mxu0
        %v593 = vadd.f32 %v460, %v592
        %v594 = vpop.f32.mrb[0].mxu0
        %595 = vdwg.mxu0
        %604 = vrot.lane.b32.xlu0 %v558, 127
        %v605 = vpop.permute.xlu0 %604
        %606 = vrot.lane.b32.xlu0 %v563, 127
        %v607 = vpop.permute.xlu0 %606
        %608 = vrot.lane.b32.xlu0 %v568, 127
        %v609 = vpop.permute.xlu0 %608
        %610 = vrot.lane.b32.xlu0 %v573, 127
        %v611 = vpop.permute.xlu0 %610
        %612 = vrot.lane.b32.xlu0 %v578, 127
        %v613 = vpop.permute.xlu0 %612
        %614 = vrot.lane.b32.xlu0 %v583, 127
        %v615 = vpop.permute.xlu0 %614
        %616 = vrot.lane.b32.xlu0 %v588, 127
        %v617 = vpop.permute.xlu0 %616
        %618 = vrot.lane.b32.xlu0 %v593, 127
        %v619 = vpop.permute.xlu0 %618
        %v628 = vadd.f32 %v558, %v605
        %v629 = vadd.f32 %v563, %v607
        %v630 = vadd.f32 %v568, %v609
        %v631 = vadd.f32 %v573, %v611
        %v632 = vadd.f32 %v578, %v613
        %v633 = vadd.f32 %v583, %v615
        %v634 = vadd.f32 %v588, %v617
        %v635 = vadd.f32 %v593, %v619
        %v636 = vxor.u32 %v628, 2147483648
        %v637 = vxor.u32 %v629, 2147483648
        %v638 = vxor.u32 %v630, 2147483648
        %v639 = vxor.u32 %v631, 2147483648
        %v640 = vxor.u32 %v632, 2147483648
        %v641 = vxor.u32 %v633, 2147483648
        %v642 = vxor.u32 %v634, 2147483648
        %v643 = vxor.u32 %v635, 2147483648
        %v644 = vmul.f32 %v636, 1.442695
        %v645 = vpow.pop %v644
        %v646 = vmul.f32 %v637, 1.442695
        %v647 = vpow.pop %v646
        %v648 = vmul.f32 %v638, 1.442695
        %v649 = vpow.pop %v648
        %v650 = vmul.f32 %v639, 1.442695
        %v651 = vpow.pop %v650
        %v652 = vmul.f32 %v640, 1.442695
        %v653 = vpow.pop %v652
        %v654 = vmul.f32 %v641, 1.442695
        %v655 = vpow.pop %v654
        %v656 = vmul.f32 %v642, 1.442695
        %v657 = vpow.pop %v656
        %v658 = vmul.f32 %v643, 1.442695
        %v659 = vpow.pop %v658
        %v660 = vadd.f32 %v645, 1.0
        %v661 = vadd.f32 %v647, 1.0
        %v662 = vadd.f32 %v649, 1.0
        %v663 = vadd.f32 %v651, 1.0
        %v664 = vadd.f32 %v653, 1.0
        %v665 = vadd.f32 %v655, 1.0
        %v666 = vadd.f32 %v657, 1.0
        %v667 = vadd.f32 %v659, 1.0
        %v668 = vrcp.pop %v660
        %v669 = vmul.f32 1.0, %v668
        %v670 = vrcp.pop %v661
        %v671 = vmul.f32 1.0, %v670
        %v672 = vrcp.pop %v662
        %v673 = vmul.f32 1.0, %v672
        %v674 = vrcp.pop %v663
        %v675 = vmul.f32 1.0, %v674
        %v676 = vrcp.pop %v664
        %v677 = vmul.f32 1.0, %v676
        %v678 = vrcp.pop %v665
        %v679 = vmul.f32 1.0, %v678
        %v680 = vrcp.pop %v666
        %v681 = vmul.f32 1.0, %v680
        %v682 = vrcp.pop %v667
        %v683 = vmul.f32 1.0, %v682
        %685 = vset.pattern.permute.xlu0 0
        %686 = vperm.xlu0 %685, %v669
        %v687 = vpop.permute.xlu0 %686
        %690 = vset.pattern.permute.xlu0 0
        %691 = vperm.xlu0 %690, %v671
        %v692 = vpop.permute.xlu0 %691
        %695 = vset.pattern.permute.xlu0 0
        %696 = vperm.xlu0 %695, %v673
        %v697 = vpop.permute.xlu0 %696
        %700 = vset.pattern.permute.xlu0 0
        %701 = vperm.xlu0 %700, %v675
        %v702 = vpop.permute.xlu0 %701
        %705 = vset.pattern.permute.xlu0 0
        %706 = vperm.xlu0 %705, %v677
        %v707 = vpop.permute.xlu0 %706
        %710 = vset.pattern.permute.xlu0 0
        %711 = vperm.xlu0 %710, %v679
        %v712 = vpop.permute.xlu0 %711
        %715 = vset.pattern.permute.xlu0 0
        %716 = vperm.xlu0 %715, %v681
        %v717 = vpop.permute.xlu0 %716
        %720 = vset.pattern.permute.xlu0 0
        %721 = vperm.xlu0 %720, %v683
        %v722 = vpop.permute.xlu0 %721
        %v724 = vmul.f32 %v243, %v687
        %v725 = vmul.f32 %v244, %v687
        %v726 = vmul.f32 %v245, %v692
        %v727 = vmul.f32 %v246, %v692
        %v728 = vmul.f32 %v247, %v697
        %v729 = vmul.f32 %v248, %v697
        %v730 = vmul.f32 %v249, %v702
        %v731 = vmul.f32 %v250, %v702
        %v732 = vmul.f32 %v251, %v707
        %v733 = vmul.f32 %v252, %v707
        %v734 = vmul.f32 %v253, %v712
        %v735 = vmul.f32 %v254, %v712
        %v736 = vmul.f32 %v255, %v717
        %v737 = vmul.f32 %v256, %v717
        %v738 = vmul.f32 %v257, %v722
        %v739 = vmul.f32 %v258, %v722
        %740 = vst [vmem:[%s242] sm:$0xff] %v724
        %741 = vst [vmem:[%s242 + $0x8] sm:$0xff] %v725
        %742 = vst [vmem:[%s242 + $0x10] sm:$0xff] %v726
        %743 = vst [vmem:[%s242 + $0x18] sm:$0xff] %v727
        %744 = vst [vmem:[%s242 + $0x20] sm:$0xff] %v728
        %745 = vst [vmem:[%s242 + $0x28] sm:$0xff] %v729
        %746 = vst [vmem:[%s242 + $0x30] sm:$0xff] %v730
        %747 = vst [vmem:[%s242 + $0x38] sm:$0xff] %v731
        %748 = vst [vmem:[%s242 + $0x40] sm:$0xff] %v732
        %749 = vst [vmem:[%s242 + $0x48] sm:$0xff] %v733
        %750 = vst [vmem:[%s242 + $0x50] sm:$0xff] %v734
        %751 = vst [vmem:[%s242 + $0x58] sm:$0xff] %v735
        %752 = vst [vmem:[%s242 + $0x60] sm:$0xff] %v736
        %753 = vst [vmem:[%s242 + $0x68] sm:$0xff] %v737
        %754 = vst [vmem:[%s242 + $0x70] sm:$0xff] %v738
        %755 = vst [vmem:[%s242 + $0x78] sm:$0xff] %v739
        %s756 = sand.u32 %s140, 1
        %s757 = scalar_lea.sflag [#allocation4], %s756
        %s758 = sand.u32 %s140, 1
        %s759 = smul.addr %s758, 128
        %s760 = scalar_lea.vmem [#allocation5], %s759
        // Predicated region
        $region45: #{tpu_custom_call.1} parent=39 // pred_check
          %p761 = pneg %p150
        $region46: #{tpu_custom_call.1} parent=39 // pred_check_branch
          %763 = sbr.rel (%p761) target = $region48
        $region47: #{tpu_custom_call.1} parent=39 // pred_region
          %s765 = ssub.s32 2048, 2048
          %766 = vsyncadd %s757, %s765
          %s767 = smul.addr %s22, 16
          %s768 = smul.addr %s767, 128
          %s769 = scalar_lea.hbm %s5, %s768
          %s770 = sshll.u32 %s760, 4
          %s771 = int_to_ptr.vmem [resolvable:$true] %s770
          %776 = dma.vmem_to_hbm [thread:$0]  %s771, 2048, %s769, %s757, 256, 256, 16
        $region48: #{tpu_custom_call.1} parent=39 // pred_fallthru
          _
      $region40: #{tpu_custom_call.1} parent=5 // pred_fallthru
        _
      %p777 = scmp.le.s32.totalorder 2, %s17
      // Predicated region
      $region49: #{tpu_custom_call.1} parent=5 // pred_check
        %p778 = pneg %p777
      $region50: #{tpu_custom_call.1} parent=5 // pred_check_branch
        %780 = sbr.rel (%p778) target = $region52
      $region51: #{tpu_custom_call.1} parent=5 // pred_region
        %s781 = ssub.s32 %s17, 2
        // Predicated region
        $region53: #{tpu_custom_call.1} parent=51 // pred_check
          %p782 = pneg %p156
        $region54: #{tpu_custom_call.1} parent=51 // pred_check_branch
          %784 = sbr.rel (%p782) target = $region56
        $region55: #{tpu_custom_call.1} parent=51 // pred_region
          %s785 = sand.u32 %s141, 1
          %s786 = scalar_lea.sflag [#allocation4], %s785
          %s787 = sand.u32 %s141, 1
          %s788 = smul.addr %s787, 128
          %s789 = scalar_lea.vmem [#allocation5], %s788
          %790 = dma.done %s786, 2048
        $region56: #{tpu_custom_call.1} parent=51 // pred_fallthru
          _
      $region52: #{tpu_custom_call.1} parent=5 // pred_fallthru
        _
    $region6: #{tpu_custom_call.1} parent=1 // loop_footer
      %s21 = sadd.s32 1, %s17
    $region7: #{tpu_custom_call.1} parent=1 // loop_footer_branch
      %16 = sbr.rel target = $region3
    $region8: #{tpu_custom_call.1} parent=1 // loop_exit
      _
    %791 = vsyncpa [#allocation3], 1
    %s792 = scalar_lea.sflag [#allocation3], 1
    %793 = vsyncpa %s792, 1
    %794 = vsyncpa [#allocation4], 1
    %s795 = scalar_lea.sflag [#allocation4], 1
    %796 = vsyncpa %s795, 1

</llo_original>
